<compile_context>
chip_gen: v5e
topology: v5e:2x2
jax: 0.10.0
libtpu: 0.0.40
codegen_flags: <defaults>
</compile_context>

<pallas_src>
import functools

import jax
import jax.numpy as jnp
from jax.experimental import pallas as pl
from jax.experimental.pallas import tpu as pltpu

GN_EPS = 1e-5

_OFFSETS = [(dh, dw) for dh in (-1, 0, 1) for dw in (-1, 0, 1)]  # tap k = kh*3+kw


# ------------------------------ fused BB kernel ------------------------------
def _bb_kernel(x_ref, w1_ref, w2_ref, w3_ref, m_ref, g_ref, b_ref, a_ref,
               o_ref, *, H, W, Nb):
    """conv1/GN/PReLU -> conv2/GN/PReLU -> conv3/GN/+x/PReLU for Nb samples.

    x_ref : (Nb, C, H*W)   lane-dense input slab
    w*_ref: (C, 9*C)       fused im2col weights, column index = tap*C + cin
    m_ref : (9*C, H*W)     precomputed border masks, pre-broadcast over C
    g/b/a : (C, 1)         GroupNorm gamma/beta, PReLU alpha
    o_ref : (Nb, C, H*W)
    """
    C = g_ref.shape[0]
    HW = H * W
    inv_cnt = 1.0 / (C * HW)

    gamma = g_ref[...].astype(jnp.float32)     # (C, 1) — broadcasts over lanes
    beta = b_ref[...].astype(jnp.float32)
    alpha = a_ref[...].astype(jnp.float32)
    mask = m_ref[...].astype(jnp.float32)      # (9C, HW), hoisted out of taps

    def im2col(act):
        # 9 shifted copies stacked along sublanes; pltpu.roll is XLU-slot work
        # and the single mask multiply zeroes every out-of-image (wrapped) tap.
        pieces = []
        for dh, dw in _OFFSETS:
            off = dh * W + dw                  # flattened tap displacement
            if off == 0:
                pieces.append(act)
            else:                              # out[p] = act[p + off]
                pieces.append(pltpu.roll(act, shift=(-off) % HW, axis=1))
        return jnp.concatenate(pieces, axis=0) * mask      # (9C, HW)

    def conv3x3(act, w_ref):
        # One K=9*C MXU contraction per conv (was nine K=C dots).
        return jnp.dot(w_ref[...], im2col(act),
                       preferred_element_type=jnp.float32)  # (C, HW)

    def gn_prelu(y, res=None):
        # GroupNorm(num_groups=1): single-pass stats over the whole (C,HW) slab.
        s1 = jnp.sum(y)
        s2 = jnp.sum(y * y)
        mean = s1 * inv_cnt
        var = s2 * inv_cnt - mean * mean       # values are O(1): safe in f32
        z = (y - mean) * jax.lax.rsqrt(var + GN_EPS)
        z = z * gamma + beta
        if res is not None:
            z = z + res
        return jnp.where(z > 0.0, z, alpha * z)

    for s in range(Nb):                        # static unroll over block samples
        x = x_ref[s].astype(jnp.float32)       # (C, HW)
        x1 = gn_prelu(conv3x3(x, w1_ref))
        x2 = gn_prelu(conv3x3(x1, w2_ref))
        o_ref[s] = gn_prelu(conv3x3(x2, w3_ref), res=x).astype(o_ref.dtype)


def _pick_samples_per_block(N, cap=8):
    """Largest divisor of N (<= cap) that still leaves >= 2 grid steps."""
    nb = 1
    for cand in range(1, min(N, cap) + 1):
        if N % cand == 0 and N // cand >= min(2, N):
            nb = cand
    return nb


@functools.partial(jax.jit, static_argnames=("samples_per_block",))
def bb_forward(x, w1, w2, w3, gamma, beta, alpha, samples_per_block=None):
    N, C, H, W = x.shape
    HW = H * W

    nb = (_pick_samples_per_block(N) if samples_per_block is None
          else samples_per_block)
    assert N % nb == 0, "samples_per_block must divide the batch size"

    def prep_w(w):   # (Cout, Cin, 3, 3) -> (Cout, 9*Cin), tap-major then cin
        return jnp.transpose(w, (0, 2, 3, 1)).reshape(C, 9 * C).astype(jnp.float32)

    # Precomputed border-validity masks (implicit zero padding), pre-broadcast
    # over channels so the kernel applies them with one multiply per conv.
    pos = jnp.arange(HW, dtype=jnp.int32)
    row = pos // W
    col = pos - row * W
    mask_rows = []
    for dh, dw in _OFFSETS:
        valid = ((row + dh >= 0) & (row + dh < H) &
                 (col + dw >= 0) & (col + dw < W)).astype(jnp.float32)
        mask_rows.append(jnp.tile(valid[None, :], (C, 1)))
    mask_slab = jnp.concatenate(mask_rows, axis=0)          # (9*C, HW)

    g2 = gamma.reshape(C, 1).astype(jnp.float32)
    b2 = beta.reshape(C, 1).astype(jnp.float32)
    a2 = alpha.reshape(C, 1).astype(jnp.float32)

    full2 = lambda n: (0, 0)
    out_flat = pl.pallas_call(
        functools.partial(_bb_kernel, H=H, W=W, Nb=nb),
        out_shape=jax.ShapeDtypeStruct((N, C, HW), x.dtype),
        grid=(N // nb,),
        in_specs=[
            pl.BlockSpec((nb, C, HW), lambda n: (n, 0, 0)),
            pl.BlockSpec((C, 9 * C), full2),
            pl.BlockSpec((C, 9 * C), full2),
            pl.BlockSpec((C, 9 * C), full2),
            pl.BlockSpec((9 * C, HW), full2),
            pl.BlockSpec((C, 1), full2),
            pl.BlockSpec((C, 1), full2),
            pl.BlockSpec((C, 1), full2),
        ],
        out_specs=pl.BlockSpec((nb, C, HW), lambda n: (n, 0, 0)),
        compiler_params=pltpu.CompilerParams(
            dimension_semantics=("parallel",)),   # batch axis -> both TCs on v7x
    )(x.reshape(N, C, HW), prep_w(w1), prep_w(w2), prep_w(w3), mask_slab,
      g2, b2, a2)
    return out_flat.reshape(N, C, H, W)


# --------------------------- pure-JAX reference -----------------------------
def _conv3x3_ref(x, w):
    N, C, H, W = x.shape
    xp = jnp.pad(x, ((0, 0), (0, 0), (1, 1), (1, 1)))
    patches = jnp.stack(
        [xp[:, :, kh:kh + H, kw:kw + W] for kh in range(3) for kw in range(3)],
        axis=2)                                     # (N, Cin, 9, H, W)
    return jnp.einsum('oip,niphw->nohw', w.reshape(C, C, 9), patches,
                      precision=jax.lax.Precision.HIGHEST)


def _gn_prelu_ref(x, gamma, beta, alpha, res=None):
    mean = x.mean(axis=(1, 2, 3), keepdims=True)
    var = ((x - mean) ** 2).mean(axis=(1, 2, 3), keepdims=True)
    y = (x - mean) * jax.lax.rsqrt(var + GN_EPS)
    y = y * gamma[None, :, None, None] + beta[None, :, None, None]
    if res is not None:
        y = y + res
    return jnp.where(y > 0, y, alpha[None, :, None, None] * y)


def bb_forward_ref(x, w1, w2, w3, gamma, beta, alpha):
    x1 = _gn_prelu_ref(_conv3x3_ref(x, w1), gamma, beta, alpha)
    x2 = _gn_prelu_ref(_conv3x3_ref(x1, w2), gamma, beta, alpha)
    return _gn_prelu_ref(_conv3x3_ref(x2, w3), gamma, beta, alpha, res=x)


# ----------------------------------- main -----------------------------------
if __name__ == "__main__":
    N, C, H, W = 2, 4, 16, 16
    key = jax.random.PRNGKey(0)
    kx, k1, k2, k3 = jax.random.split(key, 4)

    x = jax.random.normal(kx, (N, C, H, W), dtype=jnp.float32)
    # Deterministic synthetic parameters (shapes from BB.__init__).
    w1 = 0.1 * jax.random.normal(k1, (C, C, 3, 3), dtype=jnp.float32)
    w2 = 0.1 * jax.random.normal(k2, (C, C, 3, 3), dtype=jnp.float32)
    w3 = 0.1 * jax.random.normal(k3, (C, C, 3, 3), dtype=jnp.float32)
    gamma = jnp.ones((C,), dtype=jnp.float32)        # GroupNorm weight
    beta = jnp.zeros((C,), dtype=jnp.float32)        # GroupNorm bias
    alpha = jnp.full((C,), 0.25, dtype=jnp.float32)  # PReLU default slope

    out = bb_forward(x, w1, w2, w3, gamma, beta, alpha)
    out = jax.block_until_ready(out)

    ref = bb_forward_ref(x, w1, w2, w3, gamma, beta, alpha)
    assert out.shape == (N, C, H, W)
    # Tolerance leaves headroom for MXU f32 pass decomposition; any structural
    # bug (wrong tap/mask/weight ordering) would be O(0.1-1).
    assert jnp.allclose(out, ref, rtol=1e-2, atol=1e-2), (
        float(jnp.max(jnp.abs(out - ref))))

    print("KERNEL_OK")
</pallas_src>

<mosaic_0001>
module attributes {stable_mosaic.version = 11 : i64} {
  func.func @_bb_kernel(%arg0: i32, %arg1: memref<1x4x256xf32, #tpu.memory_space<vmem>>, %arg2: memref<4x36xf32, #tpu.memory_space<vmem>>, %arg3: memref<4x36xf32, #tpu.memory_space<vmem>>, %arg4: memref<4x36xf32, #tpu.memory_space<vmem>>, %arg5: memref<36x256xf32, #tpu.memory_space<vmem>>, %arg6: memref<4x1xf32, #tpu.memory_space<vmem>>, %arg7: memref<4x1xf32, #tpu.memory_space<vmem>>, %arg8: memref<4x1xf32, #tpu.memory_space<vmem>>, %arg9: memref<1x4x256xf32, #tpu.memory_space<vmem>>) attributes {dimension_semantics = [#tpu.dimension_semantics<parallel>], iteration_bounds = array<i64: 2>, scalar_prefetch = 0 : i64, scratch_operands = 0 : i64, tpu.core_type = #tpu.core_type<tc>, window_params = [{transform_indices = @transform_0, window_bounds = array<i64: 1, 4, 256>}, {pipeline_mode = #tpu.pipeline_mode<synchronous>, transform_indices = @transform_1, window_bounds = array<i64: 4, 36>}, {pipeline_mode = #tpu.pipeline_mode<synchronous>, transform_indices = @transform_2, window_bounds = array<i64: 4, 36>}, {pipeline_mode = #tpu.pipeline_mode<synchronous>, transform_indices = @transform_3, window_bounds = array<i64: 4, 36>}, {pipeline_mode = #tpu.pipeline_mode<synchronous>, transform_indices = @transform_4, window_bounds = array<i64: 36, 256>}, {pipeline_mode = #tpu.pipeline_mode<synchronous>, transform_indices = @transform_5, window_bounds = array<i64: 4, 1>}, {pipeline_mode = #tpu.pipeline_mode<synchronous>, transform_indices = @transform_6, window_bounds = array<i64: 4, 1>}, {pipeline_mode = #tpu.pipeline_mode<synchronous>, transform_indices = @transform_7, window_bounds = array<i64: 4, 1>}, {transform_indices = @transform_8, window_bounds = array<i64: 1, 4, 256>}]} {
    %c0 = arith.constant 0 : index
    %c0_0 = arith.constant 0 : index
    %0 = vector.load %arg6[%c0, %c0_0] : memref<4x1xf32, #tpu.memory_space<vmem>>, vector<4x1xf32>
    %c0_1 = arith.constant 0 : index
    %c0_2 = arith.constant 0 : index
    %1 = vector.load %arg7[%c0_1, %c0_2] : memref<4x1xf32, #tpu.memory_space<vmem>>, vector<4x1xf32>
    %c0_3 = arith.constant 0 : index
    %c0_4 = arith.constant 0 : index
    %2 = vector.load %arg8[%c0_3, %c0_4] : memref<4x1xf32, #tpu.memory_space<vmem>>, vector<4x1xf32>
    %c0_5 = arith.constant 0 : index
    %c0_6 = arith.constant 0 : index
    %3 = vector.load %arg5[%c0_5, %c0_6] : memref<36x256xf32, #tpu.memory_space<vmem>>, vector<36x256xf32>
    %c0_7 = arith.constant 0 : index
    %c0_8 = arith.constant 0 : index
    %c0_9 = arith.constant 0 : index
    %4 = vector.load %arg1[%c0_7, %c0_8, %c0_9] : memref<1x4x256xf32, #tpu.memory_space<vmem>>, vector<1x4x256xf32>
    %5 = vector.shape_cast %4 : vector<1x4x256xf32> to vector<4x256xf32>
    %c0_10 = arith.constant 0 : index
    %c0_11 = arith.constant 0 : index
    %6 = vector.load %arg2[%c0_10, %c0_11] : memref<4x36xf32, #tpu.memory_space<vmem>>, vector<4x36xf32>
    %c17_i32 = arith.constant 17 : i32
    %7 = tpu.dynamic_rotate %5 by %c17_i32 dim 1 : vector<4x256xf32>, i32 -> vector<4x256xf32>
    %c16_i32 = arith.constant 16 : i32
    %8 = tpu.dynamic_rotate %5 by %c16_i32 dim 1 : vector<4x256xf32>, i32 -> vector<4x256xf32>
    %c15_i32 = arith.constant 15 : i32
    %9 = tpu.dynamic_rotate %5 by %c15_i32 dim 1 : vector<4x256xf32>, i32 -> vector<4x256xf32>
    %c1_i32 = arith.constant 1 : i32
    %10 = tpu.dynamic_rotate %5 by %c1_i32 dim 1 : vector<4x256xf32>, i32 -> vector<4x256xf32>
    %c255_i32 = arith.constant 255 : i32
    %11 = tpu.dynamic_rotate %5 by %c255_i32 dim 1 : vector<4x256xf32>, i32 -> vector<4x256xf32>
    %c241_i32 = arith.constant 241 : i32
    %12 = tpu.dynamic_rotate %5 by %c241_i32 dim 1 : vector<4x256xf32>, i32 -> vector<4x256xf32>
    %c240_i32 = arith.constant 240 : i32
    %13 = tpu.dynamic_rotate %5 by %c240_i32 dim 1 : vector<4x256xf32>, i32 -> vector<4x256xf32>
    %c239_i32 = arith.constant 239 : i32
    %14 = tpu.dynamic_rotate %5 by %c239_i32 dim 1 : vector<4x256xf32>, i32 -> vector<4x256xf32>
    %15 = tpu.concatenate %7, %8, %9, %10, %5, %11, %12, %13, %14 in 0 : vector<4x256xf32>, vector<4x256xf32>, vector<4x256xf32>, vector<4x256xf32>, vector<4x256xf32>, vector<4x256xf32>, vector<4x256xf32>, vector<4x256xf32>, vector<4x256xf32> -> vector<36x256xf32>
    %16 = arith.mulf %15, %3 : vector<36x256xf32>
    %cst = arith.constant dense<0.000000e+00> : vector<4x256xf32>
    %17 = tpu.matmul %6, %16, %cst {dimension_numbers = #tpu.dot_dimension_numbers<[1], [0], [0], [1], [0, 0, 1, 1], [], []>} : vector<4x36xf32>, vector<36x256xf32>, vector<4x256xf32> -> vector<4x256xf32>
    %18 = vector.shape_cast %17 : vector<4x256xf32> to vector<1x4x256xf32>
    %cst_12 = arith.constant dense<0.000000e+00> : vector<1xf32>
    %19 = vector.multi_reduction <add>, %18, %cst_12 [1, 2] : vector<1x4x256xf32> to vector<1xf32>
    %20 = vector.shape_cast %19 : vector<1xf32> to vector<1x1x1xf32>
    %21 = vector.extract %20[0, 0, 0] : f32 from vector<1x1x1xf32>
    %22 = arith.mulf %17, %17 : vector<4x256xf32>
    %23 = vector.shape_cast %22 : vector<4x256xf32> to vector<1x4x256xf32>
    %cst_13 = arith.constant dense<0.000000e+00> : vector<1xf32>
    %24 = vector.multi_reduction <add>, %23, %cst_13 [1, 2] : vector<1x4x256xf32> to vector<1xf32>
    %25 = vector.shape_cast %24 : vector<1xf32> to vector<1x1x1xf32>
    %26 = vector.extract %25[0, 0, 0] : f32 from vector<1x1x1xf32>
    %cst_14 = arith.constant 9.765625E-4 : f32
    %27 = arith.mulf %21, %cst_14 : f32
    %cst_15 = arith.constant 9.765625E-4 : f32
    %28 = arith.mulf %26, %cst_15 : f32
    %29 = arith.mulf %27, %27 : f32
    %30 = arith.subf %28, %29 : f32
    %31 = vector.broadcast %27 : f32 to vector<4x256xf32>
    %32 = arith.subf %17, %31 : vector<4x256xf32>
    %cst_16 = arith.constant 9.99999974E-6 : f32
    %33 = arith.addf %30, %cst_16 : f32
    %34 = math.rsqrt %33 : f32
    %35 = vector.broadcast %34 : f32 to vector<4x256xf32>
    %36 = arith.mulf %32, %35 : vector<4x256xf32>
    %37 = vector.broadcast %0 : vector<4x1xf32> to vector<4x256xf32>
    %38 = arith.mulf %36, %37 : vector<4x256xf32>
    %39 = vector.broadcast %1 : vector<4x1xf32> to vector<4x256xf32>
    %40 = arith.addf %38, %39 : vector<4x256xf32>
    %cst_17 = arith.constant 0.000000e+00 : f32
    %41 = vector.broadcast %cst_17 : f32 to vector<4x256xf32>
    %42 = arith.cmpf ogt, %40, %41 : vector<4x256xf32>
    %43 = vector.broadcast %2 : vector<4x1xf32> to vector<4x256xf32>
    %44 = arith.mulf %43, %40 : vector<4x256xf32>
    %45 = arith.select %42, %40, %44 : vector<4x256xi1>, vector<4x256xf32>
    %c0_18 = arith.constant 0 : index
    %c0_19 = arith.constant 0 : index
    %46 = vector.load %arg3[%c0_18, %c0_19] : memref<4x36xf32, #tpu.memory_space<vmem>>, vector<4x36xf32>
    %c17_i32_20 = arith.constant 17 : i32
    %47 = tpu.dynamic_rotate %45 by %c17_i32_20 dim 1 : vector<4x256xf32>, i32 -> vector<4x256xf32>
    %c16_i32_21 = arith.constant 16 : i32
    %48 = tpu.dynamic_rotate %45 by %c16_i32_21 dim 1 : vector<4x256xf32>, i32 -> vector<4x256xf32>
    %c15_i32_22 = arith.constant 15 : i32
    %49 = tpu.dynamic_rotate %45 by %c15_i32_22 dim 1 : vector<4x256xf32>, i32 -> vector<4x256xf32>
    %c1_i32_23 = arith.constant 1 : i32
    %50 = tpu.dynamic_rotate %45 by %c1_i32_23 dim 1 : vector<4x256xf32>, i32 -> vector<4x256xf32>
    %c255_i32_24 = arith.constant 255 : i32
    %51 = tpu.dynamic_rotate %45 by %c255_i32_24 dim 1 : vector<4x256xf32>, i32 -> vector<4x256xf32>
    %c241_i32_25 = arith.constant 241 : i32
    %52 = tpu.dynamic_rotate %45 by %c241_i32_25 dim 1 : vector<4x256xf32>, i32 -> vector<4x256xf32>
    %c240_i32_26 = arith.constant 240 : i32
    %53 = tpu.dynamic_rotate %45 by %c240_i32_26 dim 1 : vector<4x256xf32>, i32 -> vector<4x256xf32>
    %c239_i32_27 = arith.constant 239 : i32
    %54 = tpu.dynamic_rotate %45 by %c239_i32_27 dim 1 : vector<4x256xf32>, i32 -> vector<4x256xf32>
    %55 = tpu.concatenate %47, %48, %49, %50, %45, %51, %52, %53, %54 in 0 : vector<4x256xf32>, vector<4x256xf32>, vector<4x256xf32>, vector<4x256xf32>, vector<4x256xf32>, vector<4x256xf32>, vector<4x256xf32>, vector<4x256xf32>, vector<4x256xf32> -> vector<36x256xf32>
    %56 = arith.mulf %55, %3 : vector<36x256xf32>
    %cst_28 = arith.constant dense<0.000000e+00> : vector<4x256xf32>
    %57 = tpu.matmul %46, %56, %cst_28 {dimension_numbers = #tpu.dot_dimension_numbers<[1], [0], [0], [1], [0, 0, 1, 1], [], []>} : vector<4x36xf32>, vector<36x256xf32>, vector<4x256xf32> -> vector<4x256xf32>
    %58 = vector.shape_cast %57 : vector<4x256xf32> to vector<1x4x256xf32>
    %cst_29 = arith.constant dense<0.000000e+00> : vector<1xf32>
    %59 = vector.multi_reduction <add>, %58, %cst_29 [1, 2] : vector<1x4x256xf32> to vector<1xf32>
    %60 = vector.shape_cast %59 : vector<1xf32> to vector<1x1x1xf32>
    %61 = vector.extract %60[0, 0, 0] : f32 from vector<1x1x1xf32>
    %62 = arith.mulf %57, %57 : vector<4x256xf32>
    %63 = vector.shape_cast %62 : vector<4x256xf32> to vector<1x4x256xf32>
    %cst_30 = arith.constant dense<0.000000e+00> : vector<1xf32>
    %64 = vector.multi_reduction <add>, %63, %cst_30 [1, 2] : vector<1x4x256xf32> to vector<1xf32>
    %65 = vector.shape_cast %64 : vector<1xf32> to vector<1x1x1xf32>
    %66 = vector.extract %65[0, 0, 0] : f32 from vector<1x1x1xf32>
    %cst_31 = arith.constant 9.765625E-4 : f32
    %67 = arith.mulf %61, %cst_31 : f32
    %cst_32 = arith.constant 9.765625E-4 : f32
    %68 = arith.mulf %66, %cst_32 : f32
    %69 = arith.mulf %67, %67 : f32
    %70 = arith.subf %68, %69 : f32
    %71 = vector.broadcast %67 : f32 to vector<4x256xf32>
    %72 = arith.subf %57, %71 : vector<4x256xf32>
    %cst_33 = arith.constant 9.99999974E-6 : f32
    %73 = arith.addf %70, %cst_33 : f32
    %74 = math.rsqrt %73 : f32
    %75 = vector.broadcast %74 : f32 to vector<4x256xf32>
    %76 = arith.mulf %72, %75 : vector<4x256xf32>
    %77 = vector.broadcast %0 : vector<4x1xf32> to vector<4x256xf32>
    %78 = arith.mulf %76, %77 : vector<4x256xf32>
    %79 = vector.broadcast %1 : vector<4x1xf32> to vector<4x256xf32>
    %80 = arith.addf %78, %79 : vector<4x256xf32>
    %cst_34 = arith.constant 0.000000e+00 : f32
    %81 = vector.broadcast %cst_34 : f32 to vector<4x256xf32>
    %82 = arith.cmpf ogt, %80, %81 : vector<4x256xf32>
    %83 = vector.broadcast %2 : vector<4x1xf32> to vector<4x256xf32>
    %84 = arith.mulf %83, %80 : vector<4x256xf32>
    %85 = arith.select %82, %80, %84 : vector<4x256xi1>, vector<4x256xf32>
    %c0_35 = arith.constant 0 : index
    %c0_36 = arith.constant 0 : index
    %86 = vector.load %arg4[%c0_35, %c0_36] : memref<4x36xf32, #tpu.memory_space<vmem>>, vector<4x36xf32>
    %c17_i32_37 = arith.constant 17 : i32
    %87 = tpu.dynamic_rotate %85 by %c17_i32_37 dim 1 : vector<4x256xf32>, i32 -> vector<4x256xf32>
    %c16_i32_38 = arith.constant 16 : i32
    %88 = tpu.dynamic_rotate %85 by %c16_i32_38 dim 1 : vector<4x256xf32>, i32 -> vector<4x256xf32>
    %c15_i32_39 = arith.constant 15 : i32
    %89 = tpu.dynamic_rotate %85 by %c15_i32_39 dim 1 : vector<4x256xf32>, i32 -> vector<4x256xf32>
    %c1_i32_40 = arith.constant 1 : i32
    %90 = tpu.dynamic_rotate %85 by %c1_i32_40 dim 1 : vector<4x256xf32>, i32 -> vector<4x256xf32>
    %c255_i32_41 = arith.constant 255 : i32
    %91 = tpu.dynamic_rotate %85 by %c255_i32_41 dim 1 : vector<4x256xf32>, i32 -> vector<4x256xf32>
    %c241_i32_42 = arith.constant 241 : i32
    %92 = tpu.dynamic_rotate %85 by %c241_i32_42 dim 1 : vector<4x256xf32>, i32 -> vector<4x256xf32>
    %c240_i32_43 = arith.constant 240 : i32
    %93 = tpu.dynamic_rotate %85 by %c240_i32_43 dim 1 : vector<4x256xf32>, i32 -> vector<4x256xf32>
    %c239_i32_44 = arith.constant 239 : i32
    %94 = tpu.dynamic_rotate %85 by %c239_i32_44 dim 1 : vector<4x256xf32>, i32 -> vector<4x256xf32>
    %95 = tpu.concatenate %87, %88, %89, %90, %85, %91, %92, %93, %94 in 0 : vector<4x256xf32>, vector<4x256xf32>, vector<4x256xf32>, vector<4x256xf32>, vector<4x256xf32>, vector<4x256xf32>, vector<4x256xf32>, vector<4x256xf32>, vector<4x256xf32> -> vector<36x256xf32>
    %96 = arith.mulf %95, %3 : vector<36x256xf32>
    %cst_45 = arith.constant dense<0.000000e+00> : vector<4x256xf32>
    %97 = tpu.matmul %86, %96, %cst_45 {dimension_numbers = #tpu.dot_dimension_numbers<[1], [0], [0], [1], [0, 0, 1, 1], [], []>} : vector<4x36xf32>, vector<36x256xf32>, vector<4x256xf32> -> vector<4x256xf32>
    %98 = vector.shape_cast %97 : vector<4x256xf32> to vector<1x4x256xf32>
    %cst_46 = arith.constant dense<0.000000e+00> : vector<1xf32>
    %99 = vector.multi_reduction <add>, %98, %cst_46 [1, 2] : vector<1x4x256xf32> to vector<1xf32>
    %100 = vector.shape_cast %99 : vector<1xf32> to vector<1x1x1xf32>
    %101 = vector.extract %100[0, 0, 0] : f32 from vector<1x1x1xf32>
    %102 = arith.mulf %97, %97 : vector<4x256xf32>
    %103 = vector.shape_cast %102 : vector<4x256xf32> to vector<1x4x256xf32>
    %cst_47 = arith.constant dense<0.000000e+00> : vector<1xf32>
    %104 = vector.multi_reduction <add>, %103, %cst_47 [1, 2] : vector<1x4x256xf32> to vector<1xf32>
    %105 = vector.shape_cast %104 : vector<1xf32> to vector<1x1x1xf32>
    %106 = vector.extract %105[0, 0, 0] : f32 from vector<1x1x1xf32>
    %cst_48 = arith.constant 9.765625E-4 : f32
    %107 = arith.mulf %101, %cst_48 : f32
    %cst_49 = arith.constant 9.765625E-4 : f32
    %108 = arith.mulf %106, %cst_49 : f32
    %109 = arith.mulf %107, %107 : f32
    %110 = arith.subf %108, %109 : f32
    %111 = vector.broadcast %107 : f32 to vector<4x256xf32>
    %112 = arith.subf %97, %111 : vector<4x256xf32>
    %cst_50 = arith.constant 9.99999974E-6 : f32
    %113 = arith.addf %110, %cst_50 : f32
    %114 = math.rsqrt %113 : f32
    %115 = vector.broadcast %114 : f32 to vector<4x256xf32>
    %116 = arith.mulf %112, %115 : vector<4x256xf32>
    %117 = vector.broadcast %0 : vector<4x1xf32> to vector<4x256xf32>
    %118 = arith.mulf %116, %117 : vector<4x256xf32>
    %119 = vector.broadcast %1 : vector<4x1xf32> to vector<4x256xf32>
    %120 = arith.addf %118, %119 : vector<4x256xf32>
    %121 = arith.addf %120, %5 : vector<4x256xf32>
    %cst_51 = arith.constant 0.000000e+00 : f32
    %122 = vector.broadcast %cst_51 : f32 to vector<4x256xf32>
    %123 = arith.cmpf ogt, %121, %122 : vector<4x256xf32>
    %124 = vector.broadcast %2 : vector<4x1xf32> to vector<4x256xf32>
    %125 = arith.mulf %124, %121 : vector<4x256xf32>
    %126 = arith.select %123, %121, %125 : vector<4x256xi1>, vector<4x256xf32>
    %c0_52 = arith.constant 0 : index
    %c0_53 = arith.constant 0 : index
    %c0_54 = arith.constant 0 : index
    %127 = vector.load %arg9[%c0_52, %c0_53, %c0_54] : memref<1x4x256xf32, #tpu.memory_space<vmem>>, vector<1x4x256xf32>
    %128 = vector.shape_cast %127 : vector<1x4x256xf32> to vector<4x256xf32>
    %129 = vector.shape_cast %126 : vector<4x256xf32> to vector<1x4x256xf32>
    tpu.vector_store %arg9[%c0_52, %c0_53, %c0_54], %129 {strides = array<i32>} : memref<1x4x256xf32, #tpu.memory_space<vmem>>, vector<1x4x256xf32>,
    return
  }
  func.func @transform_0(%arg0: i32) -> (i32, i32, i32) {
    %c0_i32 = arith.constant 0 : i32
    %c0_i32_0 = arith.constant 0 : i32
    %c0_i32_1 = arith.constant 0 : i32
    return %arg0, %c0_i32, %c0_i32_0 : i32, i32, i32
  }
  func.func @transform_1(%arg0: i32) -> (i32, i32) {
    %c0_i32 = arith.constant 0 : i32
    %c0_i32_0 = arith.constant 0 : i32
    %c0_i32_1 = arith.constant 0 : i32
    return %c0_i32, %c0_i32_0 : i32, i32
  }
  func.func @transform_2(%arg0: i32) -> (i32, i32) {
    %c0_i32 = arith.constant 0 : i32
    %c0_i32_0 = arith.constant 0 : i32
    %c0_i32_1 = arith.constant 0 : i32
    return %c0_i32, %c0_i32_0 : i32, i32
  }
  func.func @transform_3(%arg0: i32) -> (i32, i32) {
    %c0_i32 = arith.constant 0 : i32
    %c0_i32_0 = arith.constant 0 : i32
    %c0_i32_1 = arith.constant 0 : i32
    return %c0_i32, %c0_i32_0 : i32, i32
  }
  func.func @transform_4(%arg0: i32) -> (i32, i32) {
    %c0_i32 = arith.constant 0 : i32
    %c0_i32_0 = arith.constant 0 : i32
    %c0_i32_1 = arith.constant 0 : i32
    return %c0_i32, %c0_i32_0 : i32, i32
  }
  func.func @transform_5(%arg0: i32) -> (i32, i32) {
    %c0_i32 = arith.constant 0 : i32
    %c0_i32_0 = arith.constant 0 : i32
    %c0_i32_1 = arith.constant 0 : i32
    return %c0_i32, %c0_i32_0 : i32, i32
  }
  func.func @transform_6(%arg0: i32) -> (i32, i32) {
    %c0_i32 = arith.constant 0 : i32
    %c0_i32_0 = arith.constant 0 : i32
    %c0_i32_1 = arith.constant 0 : i32
    return %c0_i32, %c0_i32_0 : i32, i32
  }
  func.func @transform_7(%arg0: i32) -> (i32, i32) {
    %c0_i32 = arith.constant 0 : i32
    %c0_i32_0 = arith.constant 0 : i32
    %c0_i32_1 = arith.constant 0 : i32
    return %c0_i32, %c0_i32_0 : i32, i32
  }
  func.func @transform_8(%arg0: i32) -> (i32, i32, i32) {
    %c0_i32 = arith.constant 0 : i32
    %c0_i32_0 = arith.constant 0 : i32
    %c0_i32_1 = arith.constant 0 : i32
    return %arg0, %c0_i32, %c0_i32_0 : i32, i32, i32
  }
}

</mosaic_0001>

<llo_original>
// kernel: bb_forward.1
$region0: #{bb_forward.1}
  #allocation0 [shape = 'u32[]', space=smem, size = 0x4, offset = 0x4, fixed_abs, tag = 'smem constant byte address 0x4 - core index']
  #allocation1 [shape = 'u32[72,128]{1,0:T(1,128)}', space=vmem, size = 0x9000, scoped, tag = 'internal scratch']
  %s0 = inlined_call_operand.vmem [shape: f32[2,4,256], index: 0, kind: input, shape index: {}]
  %s1 = inlined_call_operand.vmem [shape: f32[4,36], index: 1, kind: input, shape index: {}]
  %s2 = inlined_call_operand.vmem [shape: f32[4,36], index: 2, kind: input, shape index: {}]
  %s3 = inlined_call_operand.vmem [shape: f32[4,36], index: 3, kind: input, shape index: {}]
  %s4 = inlined_call_operand.vmem [shape: f32[36,256], index: 4, kind: input, shape index: {}]
  %s5 = inlined_call_operand.vmem [shape: f32[4,1], index: 5, kind: input, shape index: {}]
  %s6 = inlined_call_operand.vmem [shape: f32[4,1], index: 6, kind: input, shape index: {}]
  %s7 = inlined_call_operand.vmem [shape: f32[4,1], index: 7, kind: input, shape index: {}]
  %s8 = inlined_call_operand.vmem [shape: f32[2,4,256], index: 8, kind: output, shape index: {}]
  %s9 = sld [smem:[#allocation0]]
  $region65: #{bb_forward.1} parent=0
    _
  %s11 = ssub.s32 1, %s9
  %s12 = scalar_select 0, %s11, %s9
  loop: start=0, step=1, limit=4
  $region2: #{bb_forward.1} parent=0 // loop_pre_header
    _
  $region3: #{bb_forward.1} parent=0 // loop_header
    %s14 = sphi 0, %s18
    %p15 = scmp.ge.s32.totalorder %s14, 4
    %s24 = sphi 0, %s26
    %s27 = sphi 0, %s24
    %s28 = sphi 0, %s27
    %s44 = sphi 0, %s28
    %s48 = sphi 0, %s48
    %s50 = sphi 0, %s48
    %s51 = sphi 0, %s50
    %s65 = sphi 0, %s51
    %s69 = sphi 0, %s69
    %s71 = sphi 0, %s69
    %s72 = sphi 0, %s71
    %s86 = sphi 0, %s72
    %s90 = sphi 0, %s90
    %s92 = sphi 0, %s90
    %s93 = sphi 0, %s92
    %s107 = sphi 0, %s93
    %s111 = sphi 0, %s111
    %s113 = sphi 0, %s111
    %s114 = sphi 0, %s113
    %s128 = sphi 0, %s114
    %s132 = sphi 0, %s132
    %s134 = sphi 0, %s132
    %s135 = sphi 0, %s134
    %s149 = sphi 0, %s135
    %s153 = sphi 0, %s153
    %s155 = sphi 0, %s153
    %s156 = sphi 0, %s155
    %s170 = sphi 0, %s156
    %s174 = sphi 0, %s174
    %s176 = sphi 0, %s174
    %s177 = sphi 0, %s176
    %s191 = sphi 0, %s177
    %s197 = sphi 0, %s199
    %s200 = sphi 0, %s197
    %s201 = sphi 0, %s200
    %s217 = sphi 0, %s201
  $region4: #{bb_forward.1} parent=0 // loop_header_branch
    %17 = sbr.rel (%p15) target = $region8
  $region5: #{bb_forward.1} parent=0 // loop_body
    %s19 = ssub.s32 %s14, 1
    %s20 = ssub.s32 %s14, 2
    %s21 = sadd.s32 %s14, 1
    %s22 = ssub.s32 %s14, %s21
    %p23 = scmp.eq.s32.totalorder %s22, 0
    %s25 = sadd.s32 %s24, 1
    %s26 = scalar_select %p23, %s24, %s25
    %p29 = pneg %p23
    %p30 = scmp.eq.s32.totalorder %s14, 1
    %p31 = por %p29, %p30
    %p32 = scmp.ne.s32.totalorder %s24, %s27
    %p33 = scmp.eq.s32.totalorder %s14, 0
    %p34 = por %p32, %p33
    %p35 = scmp.ne.s32.totalorder %s24, %s27
    %p36 = scmp.eq.s32.totalorder %s19, 1
    %p37 = por %p35, %p36
    %p38 = scmp.ne.s32.totalorder %s27, %s28
    %p39 = scmp.eq.s32.totalorder %s19, 0
    %p40 = por %p38, %p39
    %p41 = scmp.ne.s32.totalorder %s27, %s28
    %p42 = scmp.eq.s32.totalorder %s20, 1
    %p43 = por %p41, %p42
    %p45 = scmp.ne.s32.totalorder %s28, %s44
    %p46 = scmp.eq.s32.totalorder %s20, 0
    %p47 = por %p45, %p46
    %s49 = sadd.s32 %s48, 1
    %p52 = scmp.eq.s32.totalorder %s14, 1
    %p53 = scmp.ne.s32.totalorder %s48, %s50
    %p54 = scmp.eq.s32.totalorder %s14, 0
    %p55 = por %p53, %p54
    %p56 = scmp.ne.s32.totalorder %s48, %s50
    %p57 = scmp.eq.s32.totalorder %s19, 1
    %p58 = por %p56, %p57
    %p59 = scmp.ne.s32.totalorder %s50, %s51
    %p60 = scmp.eq.s32.totalorder %s19, 0
    %p61 = por %p59, %p60
    %p62 = scmp.ne.s32.totalorder %s50, %s51
    %p63 = scmp.eq.s32.totalorder %s20, 1
    %p64 = por %p62, %p63
    %p66 = scmp.ne.s32.totalorder %s51, %s65
    %p67 = scmp.eq.s32.totalorder %s20, 0
    %p68 = por %p66, %p67
    %s70 = sadd.s32 %s69, 1
    %p73 = scmp.eq.s32.totalorder %s14, 1
    %p74 = scmp.ne.s32.totalorder %s69, %s71
    %p75 = scmp.eq.s32.totalorder %s14, 0
    %p76 = por %p74, %p75
    %p77 = scmp.ne.s32.totalorder %s69, %s71
    %p78 = scmp.eq.s32.totalorder %s19, 1
    %p79 = por %p77, %p78
    %p80 = scmp.ne.s32.totalorder %s71, %s72
    %p81 = scmp.eq.s32.totalorder %s19, 0
    %p82 = por %p80, %p81
    %p83 = scmp.ne.s32.totalorder %s71, %s72
    %p84 = scmp.eq.s32.totalorder %s20, 1
    %p85 = por %p83, %p84
    %p87 = scmp.ne.s32.totalorder %s72, %s86
    %p88 = scmp.eq.s32.totalorder %s20, 0
    %p89 = por %p87, %p88
    %s91 = sadd.s32 %s90, 1
    %p94 = scmp.eq.s32.totalorder %s14, 1
    %p95 = scmp.ne.s32.totalorder %s90, %s92
    %p96 = scmp.eq.s32.totalorder %s14, 0
    %p97 = por %p95, %p96
    %p98 = scmp.ne.s32.totalorder %s90, %s92
    %p99 = scmp.eq.s32.totalorder %s19, 1
    %p100 = por %p98, %p99
    %p101 = scmp.ne.s32.totalorder %s92, %s93
    %p102 = scmp.eq.s32.totalorder %s19, 0
    %p103 = por %p101, %p102
    %p104 = scmp.ne.s32.totalorder %s92, %s93
    %p105 = scmp.eq.s32.totalorder %s20, 1
    %p106 = por %p104, %p105
    %p108 = scmp.ne.s32.totalorder %s93, %s107
    %p109 = scmp.eq.s32.totalorder %s20, 0
    %p110 = por %p108, %p109
    %s112 = sadd.s32 %s111, 1
    %p115 = scmp.eq.s32.totalorder %s14, 1
    %p116 = scmp.ne.s32.totalorder %s111, %s113
    %p117 = scmp.eq.s32.totalorder %s14, 0
    %p118 = por %p116, %p117
    %p119 = scmp.ne.s32.totalorder %s111, %s113
    %p120 = scmp.eq.s32.totalorder %s19, 1
    %p121 = por %p119, %p120
    %p122 = scmp.ne.s32.totalorder %s113, %s114
    %p123 = scmp.eq.s32.totalorder %s19, 0
    %p124 = por %p122, %p123
    %p125 = scmp.ne.s32.totalorder %s113, %s114
    %p126 = scmp.eq.s32.totalorder %s20, 1
    %p127 = por %p125, %p126
    %p129 = scmp.ne.s32.totalorder %s114, %s128
    %p130 = scmp.eq.s32.totalorder %s20, 0
    %p131 = por %p129, %p130
    %s133 = sadd.s32 %s132, 1
    %p136 = scmp.eq.s32.totalorder %s14, 1
    %p137 = scmp.ne.s32.totalorder %s132, %s134
    %p138 = scmp.eq.s32.totalorder %s14, 0
    %p139 = por %p137, %p138
    %p140 = scmp.ne.s32.totalorder %s132, %s134
    %p141 = scmp.eq.s32.totalorder %s19, 1
    %p142 = por %p140, %p141
    %p143 = scmp.ne.s32.totalorder %s134, %s135
    %p144 = scmp.eq.s32.totalorder %s19, 0
    %p145 = por %p143, %p144
    %p146 = scmp.ne.s32.totalorder %s134, %s135
    %p147 = scmp.eq.s32.totalorder %s20, 1
    %p148 = por %p146, %p147
    %p150 = scmp.ne.s32.totalorder %s135, %s149
    %p151 = scmp.eq.s32.totalorder %s20, 0
    %p152 = por %p150, %p151
    %s154 = sadd.s32 %s153, 1
    %p157 = scmp.eq.s32.totalorder %s14, 1
    %p158 = scmp.ne.s32.totalorder %s153, %s155
    %p159 = scmp.eq.s32.totalorder %s14, 0
    %p160 = por %p158, %p159
    %p161 = scmp.ne.s32.totalorder %s153, %s155
    %p162 = scmp.eq.s32.totalorder %s19, 1
    %p163 = por %p161, %p162
    %p164 = scmp.ne.s32.totalorder %s155, %s156
    %p165 = scmp.eq.s32.totalorder %s19, 0
    %p166 = por %p164, %p165
    %p167 = scmp.ne.s32.totalorder %s155, %s156
    %p168 = scmp.eq.s32.totalorder %s20, 1
    %p169 = por %p167, %p168
    %p171 = scmp.ne.s32.totalorder %s156, %s170
    %p172 = scmp.eq.s32.totalorder %s20, 0
    %p173 = por %p171, %p172
    %s175 = sadd.s32 %s174, 1
    %p178 = scmp.eq.s32.totalorder %s14, 1
    %p179 = scmp.ne.s32.totalorder %s174, %s176
    %p180 = scmp.eq.s32.totalorder %s14, 0
    %p181 = por %p179, %p180
    %p182 = scmp.ne.s32.totalorder %s174, %s176
    %p183 = scmp.eq.s32.totalorder %s19, 1
    %p184 = por %p182, %p183
    %p185 = scmp.ne.s32.totalorder %s176, %s177
    %p186 = scmp.eq.s32.totalorder %s19, 0
    %p187 = por %p185, %p186
    %p188 = scmp.ne.s32.totalorder %s176, %s177
    %p189 = scmp.eq.s32.totalorder %s20, 1
    %p190 = por %p188, %p189
    %p192 = scmp.ne.s32.totalorder %s177, %s191
    %p193 = scmp.eq.s32.totalorder %s20, 0
    %p194 = por %p192, %p193
    %s195 = ssub.s32 %s14, %s21
    %p196 = scmp.eq.s32.totalorder %s195, 0
    %s198 = sadd.s32 %s197, 1
    %s199 = scalar_select %p196, %s197, %s198
    %p202 = pneg %p196
    %p203 = scmp.eq.s32.totalorder %s14, 1
    %p204 = por %p202, %p203
    %p205 = scmp.ne.s32.totalorder %s197, %s200
    %p206 = scmp.eq.s32.totalorder %s14, 0
    %p207 = por %p205, %p206
    %p208 = scmp.ne.s32.totalorder %s197, %s200
    %p209 = scmp.eq.s32.totalorder %s19, 1
    %p210 = por %p208, %p209
    %p211 = scmp.ne.s32.totalorder %s200, %s201
    %p212 = scmp.eq.s32.totalorder %s19, 0
    %p213 = por %p211, %p212
    %p214 = scmp.ne.s32.totalorder %s200, %s201
    %p215 = scmp.eq.s32.totalorder %s20, 1
    %p216 = por %p214, %p215
    %p218 = scmp.ne.s32.totalorder %s201, %s217
    %p219 = scmp.eq.s32.totalorder %s20, 0
    %p220 = por %p218, %p219
    %p221 = scmp.le.s32.totalorder 1, %s14
    %p222 = scmp.lt.s32.totalorder %s14, 3
    %p223 = pnand %p221, %p222
    %p224 = pneg %p223
    // Predicated region
    $region9: #{bb_forward.1} parent=5 // pred_check
      _
    $region10: #{bb_forward.1} parent=5 // pred_check_branch
      %226 = sbr.rel (%p223) target = $region12
    $region11: #{bb_forward.1} parent=5 // pred_region
      %s227 = ssub.s32 %s14, 1
      // Predicated region
      $region13: #{bb_forward.1} parent=11 // pred_check
        %p228 = pneg %p61
      $region14: #{bb_forward.1} parent=11 // pred_check_branch
        %230 = sbr.rel (%p228) target = $region16
      $region15: #{bb_forward.1} parent=11 // pred_region
        _
      $region16: #{bb_forward.1} parent=11 // pred_fallthru
        _
      // Predicated region
      $region17: #{bb_forward.1} parent=11 // pred_check
        %p231 = pneg %p82
      $region18: #{bb_forward.1} parent=11 // pred_check_branch
        %233 = sbr.rel (%p231) target = $region20
      $region19: #{bb_forward.1} parent=11 // pred_region
        _
      $region20: #{bb_forward.1} parent=11 // pred_fallthru
        _
      // Predicated region
      $region21: #{bb_forward.1} parent=11 // pred_check
        %p234 = pneg %p103
      $region22: #{bb_forward.1} parent=11 // pred_check_branch
        %236 = sbr.rel (%p234) target = $region24
      $region23: #{bb_forward.1} parent=11 // pred_region
        _
      $region24: #{bb_forward.1} parent=11 // pred_fallthru
        _
      // Predicated region
      $region25: #{bb_forward.1} parent=11 // pred_check
        %p237 = pneg %p124
      $region26: #{bb_forward.1} parent=11 // pred_check_branch
        %239 = sbr.rel (%p237) target = $region28
      $region27: #{bb_forward.1} parent=11 // pred_region
        _
      $region28: #{bb_forward.1} parent=11 // pred_fallthru
        _
      // Predicated region
      $region29: #{bb_forward.1} parent=11 // pred_check
        %p240 = pneg %p145
      $region30: #{bb_forward.1} parent=11 // pred_check_branch
        %242 = sbr.rel (%p240) target = $region32
      $region31: #{bb_forward.1} parent=11 // pred_region
        _
      $region32: #{bb_forward.1} parent=11 // pred_fallthru
        _
      // Predicated region
      $region33: #{bb_forward.1} parent=11 // pred_check
        %p243 = pneg %p166
      $region34: #{bb_forward.1} parent=11 // pred_check_branch
        %245 = sbr.rel (%p243) target = $region36
      $region35: #{bb_forward.1} parent=11 // pred_region
        _
      $region36: #{bb_forward.1} parent=11 // pred_fallthru
        _
      // Predicated region
      $region37: #{bb_forward.1} parent=11 // pred_check
        %p246 = pneg %p187
      $region38: #{bb_forward.1} parent=11 // pred_check_branch
        %248 = sbr.rel (%p246) target = $region40
      $region39: #{bb_forward.1} parent=11 // pred_region
        _
      $region40: #{bb_forward.1} parent=11 // pred_fallthru
        _
    $region12: #{bb_forward.1} parent=5 // pred_fallthru
      _
    %p249 = scmp.lt.s32.totalorder %s14, 2
    // Predicated region
    $region41: #{bb_forward.1} parent=5 // pred_check
      %p250 = pneg %p249
    $region42: #{bb_forward.1} parent=5 // pred_check_branch
      %252 = sbr.rel (%p250) target = $region44
    $region43: #{bb_forward.1} parent=5 // pred_region
      // Predicated region
      $region45: #{bb_forward.1} parent=43 // pred_check
        %p253 = pneg %p34
      $region46: #{bb_forward.1} parent=43 // pred_check_branch
        %255 = sbr.rel (%p253) target = $region48
      $region47: #{bb_forward.1} parent=43 // pred_region
        %p256 = scmp.lt.s32.totalorder %s14, 1
        %s257 = scalar_select %p256, %s14, 1
        %s258 = smul.addr %s257, 2
        %s259 = smul.addr %s258, 4
        %s260 = scalar_lea.vmem %s0, %s259
      $region48: #{bb_forward.1} parent=43 // pred_fallthru
        _
    $region44: #{bb_forward.1} parent=5 // pred_fallthru
      _
    %p261 = scmp.le.s32.totalorder 1, %s14
    %p262 = scmp.lt.s32.totalorder %s14, 3
    %p263 = pnand %p261, %p262
    %p264 = pneg %p263
    // Predicated region
    $region49: #{bb_forward.1} parent=5 // pred_check
      _
    $region50: #{bb_forward.1} parent=5 // pred_check_branch
      %266 = sbr.rel (%p263) target = $region52
    $region51: #{bb_forward.1} parent=5 // pred_region
      %s267 = ssub.s32 %s14, 1
      %p268 = scmp.lt.s32.totalorder %s19, 1
      %s269 = scalar_select %p268, %s19, 1
      %s270 = smul.addr %s269, 2
      %s271 = smul.addr %s270, 4
      %s272 = scalar_lea.vmem %s0, %s271
      %p273 = pneg %p40
      %p274 = pneg %p37
      %p275 = pneg %p61
      %p276 = pneg %p58
      %p277 = pneg %p82
      %p278 = pneg %p79
      %p279 = pneg %p103
      %p280 = pneg %p100
      %p281 = pneg %p124
      %p282 = pneg %p121
      %p283 = pneg %p145
      %p284 = pneg %p142
      %p285 = pneg %p166
      %p286 = pneg %p163
      %p287 = pneg %p187
      %p288 = pneg %p184
      %p289 = pneg %p213
      %p290 = pneg %p210
      %p291 = scmp.lt.s32.totalorder %s19, 1
      %s292 = scalar_select %p291, %s19, 1
      %s293 = smul.addr %s292, 2
      %s294 = smul.addr %s293, 4
      %s295 = scalar_lea.vmem %s8, %s294
      %p296 = scmp.lt.s32.totalorder %s19, 1
      %s297 = scalar_select %p296, %s19, 1
      %s298 = smul.addr %s297, 2
      %s299 = smul.addr %s298, 4
      %s300 = scalar_lea.vmem %s0, %s299
      %p301 = scmp.lt.s32.totalorder %s19, 1
      %s302 = scalar_select %p301, %s19, 1
      %s303 = smul.addr %s302, 2
      %s304 = smul.addr %s303, 4
      %s305 = scalar_lea.vmem %s8, %s304
      %v306 = vld [vmem:[%s5] sm:$0xf]
      %v307 = vld [vmem:[%s6] sm:$0xf]
      %v308 = vld [vmem:[%s7] sm:$0xf]
      %v309 = vld [vmem:[%s4] sm:$0xff]
      %v310 = vld [vmem:[%s4 + $0x8] sm:$0xff]
      %v311 = vld [vmem:[%s4 + $0x10] sm:$0xff]
      %v312 = vld [vmem:[%s4 + $0x18] sm:$0xff]
      %v313 = vld [vmem:[%s4 + $0x20] sm:$0xff]
      %v314 = vld [vmem:[%s4 + $0x28] sm:$0xff]
      %v315 = vld [vmem:[%s4 + $0x30] sm:$0xff]
      %v316 = vld [vmem:[%s4 + $0x38] sm:$0xff]
      %v317 = vld [vmem:[%s4 + $0x40] sm:$0xf]
      %v318 = vld [vmem:[%s4 + $0x48] sm:$0xf]
      %v319 = vld [vmem:[%s300] sm:$0xff]
      %v320 = vld [vmem:[%s1] sm:$0xf]
      %322 = vst [vmem:[#allocation1] ss:$2 sm:$0xff] %v319
      %v323 = vld.sshfl [vmem:[#allocation1] sm:$0xff pattern:$0x75316420]
      %v324 = vld.sshfl [vmem:[#allocation1 + $0x8] sm:$0xff pattern:$0x75316420]
      %327 = vrot.lane.b32.xlu0 %v323, 17
      %v328 = vpop.permute.xlu0 %327
      %329 = vrot.lane.b32.xlu0 %v324, 17
      %v330 = vpop.permute.xlu0 %329
      %v331 = vlaneseq
      %v332 = vand.u32 %v331, 127
      %vm333 = vcmp.lt.s32.totalorder %v332, 17
      %v334 = vsel %vm333, %v328, %v330
      %v335 = vsel %vm333, %v330, %v328
      %336 = vst [vmem:[#allocation1] ss:$2 sm:$0xff] %v319
      %v337 = vld.sshfl [vmem:[#allocation1] sm:$0xff pattern:$0x75316420]
      %v338 = vld.sshfl [vmem:[#allocation1 + $0x8] sm:$0xff pattern:$0x75316420]
      %341 = vrot.lane.b32.xlu0 %v337, 16
      %v342 = vpop.permute.xlu0 %341
      %343 = vrot.lane.b32.xlu0 %v338, 16
      %v344 = vpop.permute.xlu0 %343
      %vm345 = vcmp.lt.s32.totalorder %v332, 16
      %v346 = vsel %vm345, %v342, %v344
      %v347 = vsel %vm345, %v344, %v342
      %348 = vst [vmem:[#allocation1] ss:$2 sm:$0xff] %v319
      %v349 = vld.sshfl [vmem:[#allocation1] sm:$0xff pattern:$0x75316420]
      %v350 = vld.sshfl [vmem:[#allocation1 + $0x8] sm:$0xff pattern:$0x75316420]
      %353 = vrot.lane.b32.xlu0 %v349, 15
      %v354 = vpop.permute.xlu0 %353
      %355 = vrot.lane.b32.xlu0 %v350, 15
      %v356 = vpop.permute.xlu0 %355
      %vm357 = vcmp.lt.s32.totalorder %v332, 15
      %v358 = vsel %vm357, %v354, %v356
      %v359 = vsel %vm357, %v356, %v354
      %360 = vst [vmem:[#allocation1] ss:$2 sm:$0xff] %v319
      %v361 = vld.sshfl [vmem:[#allocation1] sm:$0xff pattern:$0x75316420]
      %v362 = vld.sshfl [vmem:[#allocation1 + $0x8] sm:$0xff pattern:$0x75316420]
      %365 = vrot.lane.b32.xlu0 %v361, 1
      %v366 = vpop.permute.xlu0 %365
      %367 = vrot.lane.b32.xlu0 %v362, 1
      %v368 = vpop.permute.xlu0 %367
      %vm369 = vcmp.lt.s32.totalorder %v332, 1
      %v370 = vsel %vm369, %v366, %v368
      %v371 = vsel %vm369, %v368, %v366
      %372 = vst [vmem:[#allocation1] ss:$2 sm:$0xff] %v319
      %v373 = vld.sshfl [vmem:[#allocation1] sm:$0xff pattern:$0x75316420]
      %v374 = vld.sshfl [vmem:[#allocation1 + $0x8] sm:$0xff pattern:$0x75316420]
      %377 = vrot.lane.b32.xlu0 %v373, 127
      %v378 = vpop.permute.xlu0 %377
      %379 = vrot.lane.b32.xlu0 %v374, 127
      %v380 = vpop.permute.xlu0 %379
      %vm381 = vcmp.lt.s32.totalorder %v332, 127
      %v382 = vsel %vm381, %v378, %v380
      %v383 = vsel %vm381, %v380, %v378
      %384 = vst [vmem:[#allocation1] ss:$2 sm:$0xff] %v319
      %v385 = vld.sshfl [vmem:[#allocation1] sm:$0xff pattern:$0x75316420]
      %v386 = vld.sshfl [vmem:[#allocation1 + $0x8] sm:$0xff pattern:$0x75316420]
      %389 = vrot.lane.b32.xlu0 %v385, 113
      %v390 = vpop.permute.xlu0 %389
      %391 = vrot.lane.b32.xlu0 %v386, 113
      %v392 = vpop.permute.xlu0 %391
      %vm393 = vcmp.lt.s32.totalorder %v332, 113
      %v394 = vsel %vm393, %v390, %v392
      %v395 = vsel %vm393, %v392, %v390
      %396 = vst [vmem:[#allocation1] ss:$2 sm:$0xff] %v319
      %v397 = vld.sshfl [vmem:[#allocation1] sm:$0xff pattern:$0x75316420]
      %v398 = vld.sshfl [vmem:[#allocation1 + $0x8] sm:$0xff pattern:$0x75316420]
      %401 = vrot.lane.b32.xlu0 %v397, 112
      %v402 = vpop.permute.xlu0 %401
      %403 = vrot.lane.b32.xlu0 %v398, 112
      %v404 = vpop.permute.xlu0 %403
      %vm405 = vcmp.lt.s32.totalorder %v332, 112
      %v406 = vsel %vm405, %v402, %v404
      %v407 = vsel %vm405, %v404, %v402
      %408 = vst [vmem:[#allocation1] ss:$2 sm:$0xff] %v319
      %v409 = vld.sshfl [vmem:[#allocation1] sm:$0xff pattern:$0x75316420]
      %v410 = vld.sshfl [vmem:[#allocation1 + $0x8] sm:$0xff pattern:$0x75316420]
      %413 = vrot.lane.b32.xlu0 %v409, 111
      %v414 = vpop.permute.xlu0 %413
      %415 = vrot.lane.b32.xlu0 %v410, 111
      %v416 = vpop.permute.xlu0 %415
      %vm417 = vcmp.lt.s32.totalorder %v332, 111
      %v418 = vsel %vm417, %v414, %v416
      %v419 = vsel %vm417, %v416, %v414
      %v422 = vrot.slane %v347, 4
      %v423 = vrot.slane %v346, 4
      %v428 = vrot.slane %v371, 4
      %v429 = vrot.slane %v370, 4
      %432 = vst [vmem:[#allocation1] ss:$2 sm:$0xff] %v319
      %v433 = vld.sshfl [vmem:[#allocation1] sm:$0xff pattern:$0x75316420]
      %v434 = vld.sshfl [vmem:[#allocation1 + $0x8] sm:$0xff pattern:$0x75316420]
      %v439 = vrot.slane %v382, 4
      %v440 = vrot.slane %v383, 4
      %v445 = vrot.slane %v406, 4
      %v446 = vrot.slane %v407, 4
      %vm449 = vcmask 1043456
      %v450 = vsel %vm449, %v335, %v422
      %v451 = vsel %vm449, %v334, %v423
      %v452 = vsel %vm449, %v359, %v428
      %v453 = vsel %vm449, %v358, %v429
      %v454 = vsel %vm449, %v433, %v439
      %v455 = vsel %vm449, %v434, %v440
      %v456 = vsel %vm449, %v394, %v445
      %v457 = vsel %vm449, %v395, %v446
      %v458 = vmul.f32 %v450, %v309
      %v459 = vmul.f32 %v451, %v310
      %v460 = vmul.f32 %v452, %v311
      %v461 = vmul.f32 %v453, %v312
      %v462 = vmul.f32 %v454, %v313
      %v463 = vmul.f32 %v455, %v314
      %v464 = vmul.f32 %v456, %v315
      %v465 = vmul.f32 %v457, %v316
      %v466 = vmul.f32 %v418, %v317
      %v467 = vmul.f32 %v419, %v318
      %vm468 = vcmask 293888
      %v470 = vsel %vm468, %v320, 0
      %v473 = vsel %vm449, %v466, 0
      %v476 = vsel %vm449, %v467, 0
      %478 = vmatpush.msra.mxu0 0.0
      %479 = vmatpush.msra.mxu0 0.0
      %480 = vmatpush.msra.mxu0 0.0
      %481 = vmatpush.msra.mxu0 0.0
      %482 = vmatpush.msra.mxu0 0.0
      %483 = vmatpush.msra.mxu0 0.0
      %484 = vmatpush.msra.mxu0 0.0
      %485 = vmatpush.msra.mxu0 0.0
      %486 = vmatpush.msra.mxu0 0.0
      %487 = vmatpush.msra.mxu0 0.0
      %488 = vmatpush.msra.mxu0 0.0
      %489 = vmatpush.msra.mxu0 %v473
      %490 = vmatpush.msra.mxu0 %v464
      %491 = vmatpush.msra.mxu0 %v462
      %492 = vmatpush.msra.mxu0 %v460
      %493 = vmatpush.msra.mxu0 %v458
      %494 = vmatmul.f32.gmra.mxu0 %v470
      %v495 = vpop.f32.mrf.mxu0
      %v496 = vadd.f32 0.0, %v495
      %497 = vdwg.mxu0
      %498 = vmatpush.msra.mxu0 0.0
      %499 = vmatpush.msra.mxu0 0.0
      %500 = vmatpush.msra.mxu0 0.0
      %501 = vmatpush.msra.mxu0 0.0
      %502 = vmatpush.msra.mxu0 0.0
      %503 = vmatpush.msra.mxu0 0.0
      %504 = vmatpush.msra.mxu0 0.0
      %505 = vmatpush.msra.mxu0 0.0
      %506 = vmatpush.msra.mxu0 0.0
      %507 = vmatpush.msra.mxu0 0.0
      %508 = vmatpush.msra.mxu0 0.0
      %509 = vmatpush.msra.mxu0 %v476
      %510 = vmatpush.msra.mxu0 %v465
      %511 = vmatpush.msra.mxu0 %v463
      %512 = vmatpush.msra.mxu0 %v461
      %513 = vmatpush.msra.mxu0 %v459
      %514 = vmatmul.f32.gmra.mxu0 %v470
      %v515 = vpop.f32.mrf.mxu0
      %v516 = vadd.f32 0.0, %v515
      %517 = vdwg.mxu0
      %v518 = vsel %vm449, %v496, 0.0
      %v519 = vsel %vm449, %v516, 0.0
      %v520 = vadd.f32 %v518, %v519
      %521 = vadd.xlane.f32.xlu0 %v520
      %v522 = vpop.xlane.xlu0 %521
      %v523 = vrot.slane %v522, 4
      %v524 = vadd.f32 %v522, %v523
      %v525 = vrot.slane %v524, 2
      %v526 = vadd.f32 %v524, %v525
      %v527 = vrot.slane %v526, 1
      %v528 = vadd.f32 %v526, %v527
      %s529 = vtos %v528
      %v530 = vmul.f32 %v496, %v496
      %v531 = vmul.f32 %v516, %v516
      %v532 = vsel %vm449, %v530, 0.0
      %v533 = vsel %vm449, %v531, 0.0
      %v534 = vadd.f32 %v532, %v533
      %535 = vadd.xlane.f32.xlu0 %v534
      %v536 = vpop.xlane.xlu0 %535
      %v537 = vrot.slane %v536, 4
      %v538 = vadd.f32 %v536, %v537
      %v539 = vrot.slane %v538, 2
      %v540 = vadd.f32 %v538, %v539
      %v541 = vrot.slane %v540, 1
      %v542 = vadd.f32 %v540, %v541
      %s543 = vtos %v542
      %s544 = smul.f32 %s529, 0.0009765625
      %s545 = smul.f32 %s543, 0.0009765625
      %s546 = smul.f32 %s544, %s544
      %s547 = ssub.f32 %s545, %s546
      %v548 = vstv %s544
      %v549 = vsub.f32 %v496, %v548
      %v550 = vsub.f32 %v516, %v548
      %s551 = sadd.f32 %s547, 1e-05
      %v552 = vstv %s551
      %v553 = vrsqrt.pop %v552
      %v554 = vmul.f32 %v553, %v552
      %v555 = vmul.f32 %v554, %v553
      %v556 = vmul.f32 0.5, %v555
      %v557 = vsub.f32 1.5, %v556
      %v558 = vmul.f32 %v553, %v557
      %vm559 = vweird.f32 %v552
      %vm560 = vweird.f32 %v553
      %vm561 = vmor %vm559, %vm560
      %v562 = vsel %vm561, %v553, %v558
      %s563 = vtos %v562
      %v564 = vstv %s563
      %v565 = vmul.f32 %v549, %v564
      %v566 = vmul.f32 %v550, %v564
      %568 = vset.pattern.permute.xlu0 0
      %569 = vperm.xlu0 %568, %v306
      %v570 = vpop.permute.xlu0 %569
      %v572 = vmul.f32 %v565, %v570
      %v573 = vmul.f32 %v566, %v570
      %575 = vset.pattern.permute.xlu0 0
      %576 = vperm.xlu0 %575, %v307
      %v577 = vpop.permute.xlu0 %576
      %v579 = vadd.f32 %v572, %v577
      %v580 = vadd.f32 %v573, %v577
      %vm581 = vcmp.gt.f32.partialorder %v579, 0.0
      %vm582 = vcmp.gt.f32.partialorder %v580, 0.0
      %584 = vset.pattern.permute.xlu0 0
      %585 = vperm.xlu0 %584, %v308
      %v586 = vpop.permute.xlu0 %585
      %v588 = vmul.f32 %v586, %v579
      %v589 = vmul.f32 %v586, %v580
      %v590 = vsel %vm581, %v579, %v588
      %v591 = vsel %vm582, %v580, %v589
      %v592 = vld [vmem:[%s2] sm:$0xf]
      %593 = vrot.lane.b32.xlu0 %v590, 17
      %v594 = vpop.permute.xlu0 %593
      %595 = vrot.lane.b32.xlu0 %v591, 17
      %v596 = vpop.permute.xlu0 %595
      %v597 = vsel %vm333, %v594, %v596
      %v598 = vsel %vm333, %v596, %v594
      %599 = vrot.lane.b32.xlu0 %v590, 16
      %v600 = vpop.permute.xlu0 %599
      %601 = vrot.lane.b32.xlu0 %v591, 16
      %v602 = vpop.permute.xlu0 %601
      %v603 = vsel %vm345, %v600, %v602
      %v604 = vsel %vm345, %v602, %v600
      %605 = vrot.lane.b32.xlu0 %v590, 15
      %v606 = vpop.permute.xlu0 %605
      %607 = vrot.lane.b32.xlu0 %v591, 15
      %v608 = vpop.permute.xlu0 %607
      %v609 = vsel %vm357, %v606, %v608
      %v610 = vsel %vm357, %v608, %v606
      %611 = vrot.lane.b32.xlu0 %v590, 1
      %v612 = vpop.permute.xlu0 %611
      %613 = vrot.lane.b32.xlu0 %v591, 1
      %v614 = vpop.permute.xlu0 %613
      %v615 = vsel %vm369, %v612, %v614
      %v616 = vsel %vm369, %v614, %v612
      %617 = vrot.lane.b32.xlu0 %v590, 127
      %v618 = vpop.permute.xlu0 %617
      %619 = vrot.lane.b32.xlu0 %v591, 127
      %v620 = vpop.permute.xlu0 %619
      %v621 = vsel %vm381, %v618, %v620
      %v622 = vsel %vm381, %v620, %v618
      %623 = vrot.lane.b32.xlu0 %v590, 113
      %v624 = vpop.permute.xlu0 %623
      %625 = vrot.lane.b32.xlu0 %v591, 113
      %v626 = vpop.permute.xlu0 %625
      %v627 = vsel %vm393, %v624, %v626
      %v628 = vsel %vm393, %v626, %v624
      %629 = vrot.lane.b32.xlu0 %v590, 112
      %v630 = vpop.permute.xlu0 %629
      %631 = vrot.lane.b32.xlu0 %v591, 112
      %v632 = vpop.permute.xlu0 %631
      %v633 = vsel %vm405, %v630, %v632
      %v634 = vsel %vm405, %v632, %v630
      %635 = vrot.lane.b32.xlu0 %v590, 111
      %v636 = vpop.permute.xlu0 %635
      %637 = vrot.lane.b32.xlu0 %v591, 111
      %v638 = vpop.permute.xlu0 %637
      %v639 = vsel %vm417, %v636, %v638
      %v640 = vsel %vm417, %v638, %v636
      %v643 = vrot.slane %v604, 4
      %v644 = vrot.slane %v603, 4
      %v649 = vrot.slane %v616, 4
      %v650 = vrot.slane %v615, 4
      %v655 = vrot.slane %v621, 4
      %v656 = vrot.slane %v622, 4
      %v661 = vrot.slane %v633, 4
      %v662 = vrot.slane %v634, 4
      %v665 = vsel %vm449, %v598, %v643
      %v666 = vsel %vm449, %v597, %v644
      %v667 = vsel %vm449, %v610, %v649
      %v668 = vsel %vm449, %v609, %v650
      %v669 = vsel %vm449, %v590, %v655
      %v670 = vsel %vm449, %v591, %v656
      %v671 = vsel %vm449, %v627, %v661
      %v672 = vsel %vm449, %v628, %v662
      %v673 = vmul.f32 %v665, %v309
      %v674 = vmul.f32 %v666, %v310
      %v675 = vmul.f32 %v667, %v311
      %v676 = vmul.f32 %v668, %v312
      %v677 = vmul.f32 %v669, %v313
      %v678 = vmul.f32 %v670, %v314
      %v679 = vmul.f32 %v671, %v315
      %v680 = vmul.f32 %v672, %v316
      %v681 = vmul.f32 %v639, %v317
      %v682 = vmul.f32 %v640, %v318
      %v684 = vsel %vm468, %v592, 0
      %v687 = vsel %vm449, %v681, 0
      %v690 = vsel %vm449, %v682, 0
      %692 = vmatpush.msra.mxu0 0.0
      %693 = vmatpush.msra.mxu0 0.0
      %694 = vmatpush.msra.mxu0 0.0
      %695 = vmatpush.msra.mxu0 0.0
      %696 = vmatpush.msra.mxu0 0.0
      %697 = vmatpush.msra.mxu0 0.0
      %698 = vmatpush.msra.mxu0 0.0
      %699 = vmatpush.msra.mxu0 0.0
      %700 = vmatpush.msra.mxu0 0.0
      %701 = vmatpush.msra.mxu0 0.0
      %702 = vmatpush.msra.mxu0 0.0
      %703 = vmatpush.msra.mxu0 %v687
      %704 = vmatpush.msra.mxu0 %v679
      %705 = vmatpush.msra.mxu0 %v677
      %706 = vmatpush.msra.mxu0 %v675
      %707 = vmatpush.msra.mxu0 %v673
      %708 = vmatmul.f32.gmra.mxu0 %v684
      %v709 = vpop.f32.mrf.mxu0
      %v710 = vadd.f32 0.0, %v709
      %711 = vdwg.mxu0
      %712 = vmatpush.msra.mxu0 0.0
      %713 = vmatpush.msra.mxu0 0.0
      %714 = vmatpush.msra.mxu0 0.0
      %715 = vmatpush.msra.mxu0 0.0
      %716 = vmatpush.msra.mxu0 0.0
      %717 = vmatpush.msra.mxu0 0.0
      %718 = vmatpush.msra.mxu0 0.0
      %719 = vmatpush.msra.mxu0 0.0
      %720 = vmatpush.msra.mxu0 0.0
      %721 = vmatpush.msra.mxu0 0.0
      %722 = vmatpush.msra.mxu0 0.0
      %723 = vmatpush.msra.mxu0 %v690
      %724 = vmatpush.msra.mxu0 %v680
      %725 = vmatpush.msra.mxu0 %v678
      %726 = vmatpush.msra.mxu0 %v676
      %727 = vmatpush.msra.mxu0 %v674
      %728 = vmatmul.f32.gmra.mxu0 %v684
      %v729 = vpop.f32.mrf.mxu0
      %v730 = vadd.f32 0.0, %v729
      %731 = vdwg.mxu0
      %v732 = vsel %vm449, %v710, 0.0
      %v733 = vsel %vm449, %v730, 0.0
      %v734 = vadd.f32 %v732, %v733
      %735 = vadd.xlane.f32.xlu0 %v734
      %v736 = vpop.xlane.xlu0 %735
      %v737 = vrot.slane %v736, 4
      %v738 = vadd.f32 %v736, %v737
      %v739 = vrot.slane %v738, 2
      %v740 = vadd.f32 %v738, %v739
      %v741 = vrot.slane %v740, 1
      %v742 = vadd.f32 %v740, %v741
      %s743 = vtos %v742
      %v744 = vmul.f32 %v710, %v710
      %v745 = vmul.f32 %v730, %v730
      %v746 = vsel %vm449, %v744, 0.0
      %v747 = vsel %vm449, %v745, 0.0
      %v748 = vadd.f32 %v746, %v747
      %749 = vadd.xlane.f32.xlu0 %v748
      %v750 = vpop.xlane.xlu0 %749
      %v751 = vrot.slane %v750, 4
      %v752 = vadd.f32 %v750, %v751
      %v753 = vrot.slane %v752, 2
      %v754 = vadd.f32 %v752, %v753
      %v755 = vrot.slane %v754, 1
      %v756 = vadd.f32 %v754, %v755
      %s757 = vtos %v756
      %s758 = smul.f32 %s743, 0.0009765625
      %s759 = smul.f32 %s757, 0.0009765625
      %s760 = smul.f32 %s758, %s758
      %s761 = ssub.f32 %s759, %s760
      %v762 = vstv %s758
      %v763 = vsub.f32 %v710, %v762
      %v764 = vsub.f32 %v730, %v762
      %s765 = sadd.f32 %s761, 1e-05
      %v766 = vstv %s765
      %v767 = vrsqrt.pop %v766
      %v768 = vmul.f32 %v767, %v766
      %v769 = vmul.f32 %v768, %v767
      %v770 = vmul.f32 0.5, %v769
      %v771 = vsub.f32 1.5, %v770
      %v772 = vmul.f32 %v767, %v771
      %vm773 = vweird.f32 %v766
      %vm774 = vweird.f32 %v767
      %vm775 = vmor %vm773, %vm774
      %v776 = vsel %vm775, %v767, %v772
      %s777 = vtos %v776
      %v778 = vstv %s777
      %v779 = vmul.f32 %v763, %v778
      %v780 = vmul.f32 %v764, %v778
      %v781 = vmul.f32 %v779, %v570
      %v782 = vmul.f32 %v780, %v570
      %v783 = vadd.f32 %v781, %v577
      %v784 = vadd.f32 %v782, %v577
      %vm785 = vcmp.gt.f32.partialorder %v783, 0.0
      %vm786 = vcmp.gt.f32.partialorder %v784, 0.0
      %v787 = vmul.f32 %v586, %v783
      %v788 = vmul.f32 %v586, %v784
      %v789 = vsel %vm785, %v783, %v787
      %v790 = vsel %vm786, %v784, %v788
      %v791 = vld [vmem:[%s3] sm:$0xf]
      %792 = vrot.lane.b32.xlu0 %v789, 17
      %v793 = vpop.permute.xlu0 %792
      %794 = vrot.lane.b32.xlu0 %v790, 17
      %v795 = vpop.permute.xlu0 %794
      %v796 = vsel %vm333, %v793, %v795
      %v797 = vsel %vm333, %v795, %v793
      %798 = vrot.lane.b32.xlu0 %v789, 16
      %v799 = vpop.permute.xlu0 %798
      %800 = vrot.lane.b32.xlu0 %v790, 16
      %v801 = vpop.permute.xlu0 %800
      %v802 = vsel %vm345, %v799, %v801
      %v803 = vsel %vm345, %v801, %v799
      %804 = vrot.lane.b32.xlu0 %v789, 15
      %v805 = vpop.permute.xlu0 %804
      %806 = vrot.lane.b32.xlu0 %v790, 15
      %v807 = vpop.permute.xlu0 %806
      %v808 = vsel %vm357, %v805, %v807
      %v809 = vsel %vm357, %v807, %v805
      %810 = vrot.lane.b32.xlu0 %v789, 1
      %v811 = vpop.permute.xlu0 %810
      %812 = vrot.lane.b32.xlu0 %v790, 1
      %v813 = vpop.permute.xlu0 %812
      %v814 = vsel %vm369, %v811, %v813
      %v815 = vsel %vm369, %v813, %v811
      %816 = vrot.lane.b32.xlu0 %v789, 127
      %v817 = vpop.permute.xlu0 %816
      %818 = vrot.lane.b32.xlu0 %v790, 127
      %v819 = vpop.permute.xlu0 %818
      %v820 = vsel %vm381, %v817, %v819
      %v821 = vsel %vm381, %v819, %v817
      %822 = vrot.lane.b32.xlu0 %v789, 113
      %v823 = vpop.permute.xlu0 %822
      %824 = vrot.lane.b32.xlu0 %v790, 113
      %v825 = vpop.permute.xlu0 %824
      %v826 = vsel %vm393, %v823, %v825
      %v827 = vsel %vm393, %v825, %v823
      %828 = vrot.lane.b32.xlu0 %v789, 112
      %v829 = vpop.permute.xlu0 %828
      %830 = vrot.lane.b32.xlu0 %v790, 112
      %v831 = vpop.permute.xlu0 %830
      %v832 = vsel %vm405, %v829, %v831
      %v833 = vsel %vm405, %v831, %v829
      %834 = vrot.lane.b32.xlu0 %v789, 111
      %v835 = vpop.permute.xlu0 %834
      %836 = vrot.lane.b32.xlu0 %v790, 111
      %v837 = vpop.permute.xlu0 %836
      %v838 = vsel %vm417, %v835, %v837
      %v839 = vsel %vm417, %v837, %v835
      %v842 = vrot.slane %v803, 4
      %v843 = vrot.slane %v802, 4
      %v848 = vrot.slane %v815, 4
      %v849 = vrot.slane %v814, 4
      %v854 = vrot.slane %v820, 4
      %v855 = vrot.slane %v821, 4
      %v860 = vrot.slane %v832, 4
      %v861 = vrot.slane %v833, 4
      %v864 = vsel %vm449, %v797, %v842
      %v865 = vsel %vm449, %v796, %v843
      %v866 = vsel %vm449, %v809, %v848
      %v867 = vsel %vm449, %v808, %v849
      %v868 = vsel %vm449, %v789, %v854
      %v869 = vsel %vm449, %v790, %v855
      %v870 = vsel %vm449, %v826, %v860
      %v871 = vsel %vm449, %v827, %v861
      %v872 = vmul.f32 %v864, %v309
      %v873 = vmul.f32 %v865, %v310
      %v874 = vmul.f32 %v866, %v311
      %v875 = vmul.f32 %v867, %v312
      %v876 = vmul.f32 %v868, %v313
      %v877 = vmul.f32 %v869, %v314
      %v878 = vmul.f32 %v870, %v315
      %v879 = vmul.f32 %v871, %v316
      %v880 = vmul.f32 %v838, %v317
      %v881 = vmul.f32 %v839, %v318
      %v883 = vsel %vm468, %v791, 0
      %v886 = vsel %vm449, %v880, 0
      %v889 = vsel %vm449, %v881, 0
      %891 = vmatpush.msra.mxu0 0.0
      %892 = vmatpush.msra.mxu0 0.0
      %893 = vmatpush.msra.mxu0 0.0
      %894 = vmatpush.msra.mxu0 0.0
      %895 = vmatpush.msra.mxu0 0.0
      %896 = vmatpush.msra.mxu0 0.0
      %897 = vmatpush.msra.mxu0 0.0
      %898 = vmatpush.msra.mxu0 0.0
      %899 = vmatpush.msra.mxu0 0.0
      %900 = vmatpush.msra.mxu0 0.0
      %901 = vmatpush.msra.mxu0 0.0
      %902 = vmatpush.msra.mxu0 %v886
      %903 = vmatpush.msra.mxu0 %v878
      %904 = vmatpush.msra.mxu0 %v876
      %905 = vmatpush.msra.mxu0 %v874
      %906 = vmatpush.msra.mxu0 %v872
      %907 = vmatmul.f32.gmra.mxu0 %v883
      %v908 = vpop.f32.mrf.mxu0
      %v909 = vadd.f32 0.0, %v908
      %910 = vdwg.mxu0
      %911 = vmatpush.msra.mxu0 0.0
      %912 = vmatpush.msra.mxu0 0.0
      %913 = vmatpush.msra.mxu0 0.0
      %914 = vmatpush.msra.mxu0 0.0
      %915 = vmatpush.msra.mxu0 0.0
      %916 = vmatpush.msra.mxu0 0.0
      %917 = vmatpush.msra.mxu0 0.0
      %918 = vmatpush.msra.mxu0 0.0
      %919 = vmatpush.msra.mxu0 0.0
      %920 = vmatpush.msra.mxu0 0.0
      %921 = vmatpush.msra.mxu0 0.0
      %922 = vmatpush.msra.mxu0 %v889
      %923 = vmatpush.msra.mxu0 %v879
      %924 = vmatpush.msra.mxu0 %v877
      %925 = vmatpush.msra.mxu0 %v875
      %926 = vmatpush.msra.mxu0 %v873
      %927 = vmatmul.f32.gmra.mxu0 %v883
      %v928 = vpop.f32.mrf.mxu0
      %v929 = vadd.f32 0.0, %v928
      %930 = vdwg.mxu0
      %v931 = vsel %vm449, %v909, 0.0
      %v932 = vsel %vm449, %v929, 0.0
      %v933 = vadd.f32 %v931, %v932
      %934 = vadd.xlane.f32.xlu0 %v933
      %v935 = vpop.xlane.xlu0 %934
      %v936 = vrot.slane %v935, 4
      %v937 = vadd.f32 %v935, %v936
      %v938 = vrot.slane %v937, 2
      %v939 = vadd.f32 %v937, %v938
      %v940 = vrot.slane %v939, 1
      %v941 = vadd.f32 %v939, %v940
      %s942 = vtos %v941
      %v943 = vmul.f32 %v909, %v909
      %v944 = vmul.f32 %v929, %v929
      %v945 = vsel %vm449, %v943, 0.0
      %v946 = vsel %vm449, %v944, 0.0
      %v947 = vadd.f32 %v945, %v946
      %948 = vadd.xlane.f32.xlu0 %v947
      %v949 = vpop.xlane.xlu0 %948
      %v950 = vrot.slane %v949, 4
      %v951 = vadd.f32 %v949, %v950
      %v952 = vrot.slane %v951, 2
      %v953 = vadd.f32 %v951, %v952
      %v954 = vrot.slane %v953, 1
      %v955 = vadd.f32 %v953, %v954
      %s956 = vtos %v955
      %s957 = smul.f32 %s942, 0.0009765625
      %s958 = smul.f32 %s956, 0.0009765625
      %s959 = smul.f32 %s957, %s957
      %s960 = ssub.f32 %s958, %s959
      %v961 = vstv %s957
      %v962 = vsub.f32 %v909, %v961
      %v963 = vsub.f32 %v929, %v961
      %s964 = sadd.f32 %s960, 1e-05
      %v965 = vstv %s964
      %v966 = vrsqrt.pop %v965
      %v967 = vmul.f32 %v966, %v965
      %v968 = vmul.f32 %v967, %v966
      %v969 = vmul.f32 0.5, %v968
      %v970 = vsub.f32 1.5, %v969
      %v971 = vmul.f32 %v966, %v970
      %vm972 = vweird.f32 %v965
      %vm973 = vweird.f32 %v966
      %vm974 = vmor %vm972, %vm973
      %v975 = vsel %vm974, %v966, %v971
      %s976 = vtos %v975
      %v977 = vstv %s976
      %v978 = vmul.f32 %v962, %v977
      %v979 = vmul.f32 %v963, %v977
      %v980 = vmul.f32 %v978, %v570
      %v981 = vmul.f32 %v979, %v570
      %v982 = vadd.f32 %v980, %v577
      %v983 = vadd.f32 %v981, %v577
      %984 = vst [vmem:[#allocation1] ss:$2 sm:$0xff] %v319
      %v985 = vld.sshfl [vmem:[#allocation1] sm:$0xff pattern:$0x75316420]
      %v986 = vld.sshfl [vmem:[#allocation1 + $0x8] sm:$0xff pattern:$0x75316420]
      %v989 = vadd.f32 %v982, %v985
      %v990 = vadd.f32 %v983, %v986
      %vm991 = vcmp.gt.f32.partialorder %v989, 0.0
      %vm992 = vcmp.gt.f32.partialorder %v990, 0.0
      %v993 = vmul.f32 %v586, %v989
      %v994 = vmul.f32 %v586, %v990
      %v995 = vsel %vm991, %v989, %v993
      %v996 = vsel %vm992, %v990, %v994
      %v999 = vrot.slane %v996, 4
      %v1000 = vsel %vm449, %v995, %v999
      %1002 = vst [vmem:[%s305] sm:$0xff] %v1000
      %p1003 = scmp.lt.s32.totalorder %s19, 1
      %s1004 = scalar_select %p1003, %s19, 1
      %s1005 = smul.addr %s1004, 2
      %s1006 = smul.addr %s1005, 4
      %s1007 = scalar_lea.vmem %s8, %s1006
      // Predicated region
      $region53: #{bb_forward.1} parent=51 // pred_check
        %p1008 = pneg %p210
      $region54: #{bb_forward.1} parent=51 // pred_check_branch
        %1010 = sbr.rel (%p1008) target = $region56
      $region55: #{bb_forward.1} parent=51 // pred_region
        _
      $region56: #{bb_forward.1} parent=51 // pred_fallthru
        _
    $region52: #{bb_forward.1} parent=5 // pred_fallthru
      _
    %p1011 = scmp.le.s32.totalorder 2, %s14
    // Predicated region
    $region57: #{bb_forward.1} parent=5 // pred_check
      %p1012 = pneg %p1011
    $region58: #{bb_forward.1} parent=5 // pred_check_branch
      %1014 = sbr.rel (%p1012) target = $region60
    $region59: #{bb_forward.1} parent=5 // pred_region
      %s1015 = ssub.s32 %s14, 2
      // Predicated region
      $region61: #{bb_forward.1} parent=59 // pred_check
        %p1016 = pneg %p216
      $region62: #{bb_forward.1} parent=59 // pred_check_branch
        %1018 = sbr.rel (%p1016) target = $region64
      $region63: #{bb_forward.1} parent=59 // pred_region
        %p1019 = scmp.lt.s32.totalorder %s20, 1
        %s1020 = scalar_select %p1019, %s20, 1
        %s1021 = smul.addr %s1020, 2
        %s1022 = smul.addr %s1021, 4
        %s1023 = scalar_lea.vmem %s8, %s1022
      $region64: #{bb_forward.1} parent=59 // pred_fallthru
        _
    $region60: #{bb_forward.1} parent=5 // pred_fallthru
      _
  $region6: #{bb_forward.1} parent=0 // loop_footer
    %s18 = sadd.s32 1, %s14
  $region7: #{bb_forward.1} parent=0 // loop_footer_branch
    %13 = sbr.rel target = $region3
  $region8: #{bb_forward.1} parent=0 // loop_exit
    _

</llo_original>
